<compile_context>
chip_gen: v7x
topology: tpu7x:2x2x1
jax: 0.10.0
libtpu: 0.0.40
codegen_flags: <defaults>
</compile_context>

<pallas_src>
import math
import functools

import numpy as np
import jax
import jax.numpy as jnp
from jax.experimental import pallas as pl
from jax.experimental.pallas import tpu as pltpu


def _round_up(x, m):
    return (x + m - 1) // m * m


def _pe_kernel(coords_ref, w_ref, phase_ref, out_ref):
    # coords_ref: (1, TN, in_dim)   w_ref: (in_dim, d_pad)
    # phase_ref:  (1, d_pad)        out_ref: (1, TN, d_pad)
    c = coords_ref[0]                                                # (TN, in_dim)
    angles = jnp.dot(c, w_ref[...], preferred_element_type=jnp.float32)
    # cos(x) == sin(x + pi/2): exactly one EUP transcendental per element.
    out_ref[0] = jnp.sin(angles + phase_ref[...]).astype(out_ref.dtype)


@functools.lru_cache(maxsize=None)
def _pe_params(d_model, in_dim, d_pad):
    """Frequency-placement matrix W (in_dim, d_pad) and phase row (1, d_pad)."""
    F = d_model // (2 * in_dim)
    assert F * 2 * in_dim == d_model, "d_model must be divisible by 2*in_dim"
    freqs = np.exp(np.arange(F, dtype=np.float32) * (-math.log(10000.0) / F))
    W = np.zeros((in_dim, d_pad), dtype=np.float32)
    phase = np.zeros((1, d_pad), dtype=np.float32)
    half_pi = np.float32(math.pi / 2.0)
    for d in range(in_dim):
        base = d * 2 * F
        W[d, base:base + F] = freqs              # sin slots: phase 0
        W[d, base + F:base + 2 * F] = freqs      # cos slots: phase pi/2
        phase[0, base + F:base + 2 * F] = half_pi
    # padded columns (d_model .. d_pad) stay zero -> sin(0) = 0, sliced off later
    return jnp.asarray(W), jnp.asarray(phase)


def _choose_tile_n(N, max_tn=1024):
    """Largest row tile (<= max_tn) that evenly divides N; full N if small.

    Capped at 1024 rows so the double-buffered output tile + f32 angles temp
    stay well under v7x's 32 MiB default scoped VMEM even at large d_model.
    """
    if N <= max_tn:
        return N
    for tn in (1024, 512, 256, 128, 64, 32, 16, 8):
        if N % tn == 0:
            return tn
    # TODO(synk): pad N in the wrapper for huge N not divisible by 8; a single
    # full-N tile is correct but can exceed VMEM for very large N.
    return N


def spatial_positional_encoding(coords, d_model, in_dim=6, out_dtype=jnp.float32):
    """coords: (B, N, in_dim) -> (B, N, d_model) positional encoding."""
    B, N, cdim = coords.shape
    assert cdim == in_dim
    if coords.dtype != jnp.float32:
        coords = coords.astype(jnp.float32)

    d_pad = _round_up(d_model, 128)              # lane-dense output stores
    W, phase = _pe_params(d_model, in_dim, d_pad)
    tn = _choose_tile_n(N)
    grid = (B, N // tn)

    out_bytes = B * N * d_pad * jnp.dtype(out_dtype).itemsize
    cost = pl.CostEstimate(
        flops=2 * B * N * in_dim * d_pad,
        transcendentals=B * N * d_pad,
        bytes_accessed=B * N * in_dim * 4 + W.size * 4 + phase.size * 4 + out_bytes,
    )

    pe = pl.pallas_call(
        _pe_kernel,
        out_shape=jax.ShapeDtypeStruct((B, N, d_pad), out_dtype),
        grid_spec=pltpu.PrefetchScalarGridSpec(
            num_scalar_prefetch=0,
            grid=grid,
            in_specs=[
                # blocks use either tile-aligned sizes or full array extents,
                # so the (8,128) divisibility rule is satisfied.
                pl.BlockSpec((1, tn, in_dim), lambda b, n: (b, n, 0)),
                pl.BlockSpec((in_dim, d_pad), lambda b, n: (0, 0)),
                pl.BlockSpec((1, d_pad), lambda b, n: (0, 0)),
            ],
            out_specs=pl.BlockSpec((1, tn, d_pad), lambda b, n: (b, n, 0)),
        ),
        compiler_params=pltpu.CompilerParams(
            dimension_semantics=("parallel", "parallel"),
        ),
        cost_estimate=cost,
    )(coords, W, phase)

    if d_pad != d_model:
        pe = pe[..., :d_model]
    return pe


def _reference_pe(coords, d_model, in_dim=6):
    """Pure-JAX replica of the PyTorch forward for verification."""
    F = d_model // (2 * in_dim)
    freqs = jnp.exp(
        jnp.arange(F, dtype=jnp.float32) * (-math.log(10000.0) / F)
    ).reshape(1, 1, 1, F)
    B, N, _ = coords.shape
    angles = coords[..., None] * freqs                      # (B, N, in_dim, F)
    pe = jnp.concatenate([jnp.sin(angles), jnp.cos(angles)], axis=-1)
    return pe.reshape(B, N, d_model)


if __name__ == "__main__":
    B, N, in_dim, d_model = 2, 16, 6, 24   # F = d_model // (2*in_dim) = 2

    key = jax.random.PRNGKey(0)
    coords = jax.random.uniform(
        key, (B, N, in_dim), dtype=jnp.float32, minval=-5.0, maxval=5.0
    )

    pe = spatial_positional_encoding(coords, d_model, in_dim)
    pe = jax.block_until_ready(pe)

    ref = _reference_pe(coords, d_model, in_dim)
    assert pe.shape == (B, N, d_model)
    assert pe.dtype == jnp.float32
    assert jnp.allclose(pe, ref, atol=1e-5, rtol=1e-5), "mismatch vs reference"

    print("KERNEL_OK")
</pallas_src>

<mosaic_0001>
module attributes {stable_mosaic.version = 11 : i64} {
  func.func @_pe_kernel(%arg0: i32, %arg1: i32, %arg2: memref<1x16x6xf32, #tpu.memory_space<vmem>>, %arg3: memref<6x128xf32, #tpu.memory_space<vmem>>, %arg4: memref<1x128xf32, #tpu.memory_space<vmem>>, %arg5: memref<1x16x128xf32, #tpu.memory_space<vmem>>) attributes {dimension_semantics = [#tpu.dimension_semantics<parallel>, #tpu.dimension_semantics<parallel>], iteration_bounds = array<i64: 2, 1>, scalar_prefetch = 0 : i64, scratch_operands = 0 : i64, tpu.core_type = #tpu.core_type<tc>, window_params = [{transform_indices = @transform_0, window_bounds = array<i64: 1, 16, 6>}, {pipeline_mode = #tpu.pipeline_mode<synchronous>, transform_indices = @transform_1, window_bounds = array<i64: 6, 128>}, {pipeline_mode = #tpu.pipeline_mode<synchronous>, transform_indices = @transform_2, window_bounds = array<i64: 1, 128>}, {transform_indices = @transform_3, window_bounds = array<i64: 1, 16, 128>}]} {
    %c0 = arith.constant 0 : index
    %c0_0 = arith.constant 0 : index
    %c0_1 = arith.constant 0 : index
    %0 = vector.load %arg2[%c0, %c0_0, %c0_1] : memref<1x16x6xf32, #tpu.memory_space<vmem>>, vector<1x16x6xf32>
    %1 = vector.shape_cast %0 : vector<1x16x6xf32> to vector<16x6xf32>
    %c0_2 = arith.constant 0 : index
    %c0_3 = arith.constant 0 : index
    %2 = vector.load %arg3[%c0_2, %c0_3] : memref<6x128xf32, #tpu.memory_space<vmem>>, vector<6x128xf32>
    %cst = arith.constant dense<0.000000e+00> : vector<16x128xf32>
    %3 = tpu.matmul %1, %2, %cst {dimension_numbers = #tpu.dot_dimension_numbers<[1], [0], [0], [1], [0, 0, 1, 1], [], []>} : vector<16x6xf32>, vector<6x128xf32>, vector<16x128xf32> -> vector<16x128xf32>
    %c0_4 = arith.constant 0 : index
    %c0_5 = arith.constant 0 : index
    %4 = vector.load %arg4[%c0_4, %c0_5] : memref<1x128xf32, #tpu.memory_space<vmem>>, vector<1x128xf32>
    %5 = vector.broadcast %4 : vector<1x128xf32> to vector<16x128xf32>
    %6 = arith.addf %3, %5 : vector<16x128xf32>
    %7 = math.sin %6 : vector<16x128xf32>
    %c0_6 = arith.constant 0 : index
    %c0_7 = arith.constant 0 : index
    %c0_8 = arith.constant 0 : index
    %8 = vector.load %arg5[%c0_6, %c0_7, %c0_8] : memref<1x16x128xf32, #tpu.memory_space<vmem>>, vector<1x16x128xf32>
    %9 = vector.shape_cast %8 : vector<1x16x128xf32> to vector<16x128xf32>
    %10 = vector.shape_cast %7 : vector<16x128xf32> to vector<1x16x128xf32>
    tpu.vector_store %arg5[%c0_6, %c0_7, %c0_8], %10 {strides = array<i32>} : memref<1x16x128xf32, #tpu.memory_space<vmem>>, vector<1x16x128xf32>,
    return
  }
  func.func @transform_0(%arg0: i32, %arg1: i32) -> (i32, i32, i32) {
    %c0_i32 = arith.constant 0 : i32
    %c0_i32_0 = arith.constant 0 : i32
    return %arg0, %arg1, %c0_i32 : i32, i32, i32
  }
  func.func @transform_1(%arg0: i32, %arg1: i32) -> (i32, i32) {
    %c0_i32 = arith.constant 0 : i32
    %c0_i32_0 = arith.constant 0 : i32
    %c0_i32_1 = arith.constant 0 : i32
    return %c0_i32, %c0_i32_0 : i32, i32
  }
  func.func @transform_2(%arg0: i32, %arg1: i32) -> (i32, i32) {
    %c0_i32 = arith.constant 0 : i32
    %c0_i32_0 = arith.constant 0 : i32
    %c0_i32_1 = arith.constant 0 : i32
    return %c0_i32, %c0_i32_0 : i32, i32
  }
  func.func @transform_3(%arg0: i32, %arg1: i32) -> (i32, i32, i32) {
    %c0_i32 = arith.constant 0 : i32
    %c0_i32_0 = arith.constant 0 : i32
    return %arg0, %arg1, %c0_i32 : i32, i32, i32
  }
}

</mosaic_0001>

<llo_original>
// kernel: tpu_custom_call.1
$region0: #{tpu_custom_call.1}
  #allocation0 [shape = 'u32[]', space=smem, size = 0x4, offset = 0x4, fixed_abs, tag = 'smem constant byte address 0x4 - core index']
  #allocation1 [shape = 'u32[144,128]{1,0:T(1,128)}', space=vmem, size = 0x12000, scoped, tag = 'internal scratch']
  %s0 = inlined_call_operand.vmem [shape: f32[2,16,6], index: 0, kind: input, shape index: {}]
  %s1 = inlined_call_operand.vmem [shape: f32[6,128], index: 1, kind: input, shape index: {}]
  %s2 = inlined_call_operand.vmem [shape: f32[1,128], index: 2, kind: input, shape index: {}]
  %s3 = inlined_call_operand.hbm [shape: f32[2,16,128], index: 3, kind: output, shape index: {}]
  %s4 = sld [smem:[#allocation0]]
  $region45: #{tpu_custom_call.1} parent=0
    _
  %s6 = ssub.s32 1, %s4
  %s7 = scalar_select 0, %s6, %s4
  $region1: #{tpu_custom_call.1} parent=0
    #allocation2 [shape = 'u8[16384]{0}', space=vmem, size = 0x4000, scoped, tag = 'output window, operand 0']
    #allocation3 [shape = 's32[2]{0}', space=sflag, size = 0x8, scoped, tag = 'scoped memory for tpu_custom_call.1']
    %8 = vsyncpa [#allocation3], 0
    %s9 = scalar_lea.sflag [#allocation3], 1
    %10 = vsyncpa %s9, 0
    loop: start=0, step=1, limit=4
    $region2: #{tpu_custom_call.1} parent=1 // loop_pre_header
      _
    $region3: #{tpu_custom_call.1} parent=1 // loop_header
      %s12 = sphi 0, %s16
      %p13 = scmp.ge.s32.totalorder %s12, 4
      %s19 = sphi 0, %s31
      %s20 = sphi 0, %s27
      %s21 = sphi 0, %s19
      %s22 = sphi 0, %s20
      %s23 = sphi 0, %s21
      %s24 = sphi 0, %s22
      %s36 = sphi 0, %s38
      %s39 = sphi 0, %s36
      %s40 = sphi 0, %s39
      %s56 = sphi 0, %s40
      %s60 = sphi 0, %s60
      %s62 = sphi 0, %s60
      %s63 = sphi 0, %s62
      %s77 = sphi 0, %s63
      %s81 = sphi 0, %s81
      %s83 = sphi 0, %s81
      %s84 = sphi 0, %s83
      %s98 = sphi 0, %s84
      %s106 = sphi 0, %s108
      %s109 = sphi 0, %s106
      %s110 = sphi 0, %s109
      %s126 = sphi 0, %s110
    $region4: #{tpu_custom_call.1} parent=1 // loop_header_branch
      %15 = sbr.rel (%p13) target = $region8
    $region5: #{tpu_custom_call.1} parent=1 // loop_body
      %s17 = ssub.s32 %s12, 1
      %s18 = ssub.s32 %s12, 2
      %s25 = sadd.s32 1, %s20
      %p26 = scmp.ge.s32.totalorder %s25, 1
      %s27 = scalar_select %p26, 0, %s25
      %s28 = sadd.s32 1, %s19
      %s29 = scalar_select %p26, %s28, %s19
      %p30 = scmp.ge.s32.totalorder %s29, 2
      %s31 = scalar_select %p30, 0, %s29
      %s32 = ssub.s32 %s19, %s31
      %s33 = ssub.s32 %s20, %s27
      %s34 = sor.u32 %s32, %s33
      %p35 = scmp.eq.s32.totalorder %s34, 0
      %s37 = sadd.s32 %s36, 1
      %s38 = scalar_select %p35, %s36, %s37
      %p41 = pneg %p35
      %p42 = scmp.eq.s32.totalorder %s12, 1
      %p43 = por %p41, %p42
      %p44 = scmp.ne.s32.totalorder %s36, %s39
      %p45 = scmp.eq.s32.totalorder %s12, 0
      %p46 = por %p44, %p45
      %p47 = scmp.ne.s32.totalorder %s36, %s39
      %p48 = scmp.eq.s32.totalorder %s17, 1
      %p49 = por %p47, %p48
      %p50 = scmp.ne.s32.totalorder %s39, %s40
      %p51 = scmp.eq.s32.totalorder %s17, 0
      %p52 = por %p50, %p51
      %p53 = scmp.ne.s32.totalorder %s39, %s40
      %p54 = scmp.eq.s32.totalorder %s18, 1
      %p55 = por %p53, %p54
      %p57 = scmp.ne.s32.totalorder %s40, %s56
      %p58 = scmp.eq.s32.totalorder %s18, 0
      %p59 = por %p57, %p58
      %s61 = sadd.s32 %s60, 1
      %p64 = scmp.eq.s32.totalorder %s12, 1
      %p65 = scmp.ne.s32.totalorder %s60, %s62
      %p66 = scmp.eq.s32.totalorder %s12, 0
      %p67 = por %p65, %p66
      %p68 = scmp.ne.s32.totalorder %s60, %s62
      %p69 = scmp.eq.s32.totalorder %s17, 1
      %p70 = por %p68, %p69
      %p71 = scmp.ne.s32.totalorder %s62, %s63
      %p72 = scmp.eq.s32.totalorder %s17, 0
      %p73 = por %p71, %p72
      %p74 = scmp.ne.s32.totalorder %s62, %s63
      %p75 = scmp.eq.s32.totalorder %s18, 1
      %p76 = por %p74, %p75
      %p78 = scmp.ne.s32.totalorder %s63, %s77
      %p79 = scmp.eq.s32.totalorder %s18, 0
      %p80 = por %p78, %p79
      %s82 = sadd.s32 %s81, 1
      %p85 = scmp.eq.s32.totalorder %s12, 1
      %p86 = scmp.ne.s32.totalorder %s81, %s83
      %p87 = scmp.eq.s32.totalorder %s12, 0
      %p88 = por %p86, %p87
      %p89 = scmp.ne.s32.totalorder %s81, %s83
      %p90 = scmp.eq.s32.totalorder %s17, 1
      %p91 = por %p89, %p90
      %p92 = scmp.ne.s32.totalorder %s83, %s84
      %p93 = scmp.eq.s32.totalorder %s17, 0
      %p94 = por %p92, %p93
      %p95 = scmp.ne.s32.totalorder %s83, %s84
      %p96 = scmp.eq.s32.totalorder %s18, 1
      %p97 = por %p95, %p96
      %p99 = scmp.ne.s32.totalorder %s84, %s98
      %p100 = scmp.eq.s32.totalorder %s18, 0
      %p101 = por %p99, %p100
      %s102 = ssub.s32 %s19, %s31
      %s103 = ssub.s32 %s20, %s27
      %s104 = sor.u32 %s102, %s103
      %p105 = scmp.eq.s32.totalorder %s104, 0
      %s107 = sadd.s32 %s106, 1
      %s108 = scalar_select %p105, %s106, %s107
      %p111 = pneg %p105
      %p112 = scmp.eq.s32.totalorder %s12, 1
      %p113 = por %p111, %p112
      %p114 = scmp.ne.s32.totalorder %s106, %s109
      %p115 = scmp.eq.s32.totalorder %s12, 0
      %p116 = por %p114, %p115
      %p117 = scmp.ne.s32.totalorder %s106, %s109
      %p118 = scmp.eq.s32.totalorder %s17, 1
      %p119 = por %p117, %p118
      %p120 = scmp.ne.s32.totalorder %s109, %s110
      %p121 = scmp.eq.s32.totalorder %s17, 0
      %p122 = por %p120, %p121
      %p123 = scmp.ne.s32.totalorder %s109, %s110
      %p124 = scmp.eq.s32.totalorder %s18, 1
      %p125 = por %p123, %p124
      %p127 = scmp.ne.s32.totalorder %s110, %s126
      %p128 = scmp.eq.s32.totalorder %s18, 0
      %p129 = por %p127, %p128
      %p130 = scmp.le.s32.totalorder 1, %s12
      %p131 = scmp.lt.s32.totalorder %s12, 3
      %p132 = pnand %p130, %p131
      %p133 = pneg %p132
      // Predicated region
      $region9: #{tpu_custom_call.1} parent=5 // pred_check
        _
      $region10: #{tpu_custom_call.1} parent=5 // pred_check_branch
        %135 = sbr.rel (%p132) target = $region12
      $region11: #{tpu_custom_call.1} parent=5 // pred_region
        %s136 = ssub.s32 %s12, 1
        // Predicated region
        $region13: #{tpu_custom_call.1} parent=11 // pred_check
          %p137 = pneg %p73
        $region14: #{tpu_custom_call.1} parent=11 // pred_check_branch
          %139 = sbr.rel (%p137) target = $region16
        $region15: #{tpu_custom_call.1} parent=11 // pred_region
          _
        $region16: #{tpu_custom_call.1} parent=11 // pred_fallthru
          _
        // Predicated region
        $region17: #{tpu_custom_call.1} parent=11 // pred_check
          %p140 = pneg %p94
        $region18: #{tpu_custom_call.1} parent=11 // pred_check_branch
          %142 = sbr.rel (%p140) target = $region20
        $region19: #{tpu_custom_call.1} parent=11 // pred_region
          _
        $region20: #{tpu_custom_call.1} parent=11 // pred_fallthru
          _
      $region12: #{tpu_custom_call.1} parent=5 // pred_fallthru
        _
      %p143 = scmp.lt.s32.totalorder %s12, 2
      // Predicated region
      $region21: #{tpu_custom_call.1} parent=5 // pred_check
        %p144 = pneg %p143
      $region22: #{tpu_custom_call.1} parent=5 // pred_check_branch
        %146 = sbr.rel (%p144) target = $region24
      $region23: #{tpu_custom_call.1} parent=5 // pred_region
        // Predicated region
        $region25: #{tpu_custom_call.1} parent=23 // pred_check
          %p147 = pneg %p46
        $region26: #{tpu_custom_call.1} parent=23 // pred_check_branch
          %149 = sbr.rel (%p147) target = $region28
        $region27: #{tpu_custom_call.1} parent=23 // pred_region
          %s150 = smul.u32 2, %s20
          %p151 = scmp.lt.s32.totalorder %s19, 1
          %s152 = scalar_select %p151, %s19, 1
          %p153 = scmp.lt.s32.totalorder %s150, 1
          %s154 = scalar_select %p153, %s150, 1
          %s155 = smul.addr %s152, 2
          %s156 = sadd.s32 %s154, %s155
          %s157 = smul.addr %s156, 8
          %s158 = scalar_lea.vmem %s0, %s157
          %s159 = smul.u32 2, %s20
        $region28: #{tpu_custom_call.1} parent=23 // pred_fallthru
          _
      $region24: #{tpu_custom_call.1} parent=5 // pred_fallthru
        _
      %p160 = scmp.le.s32.totalorder 1, %s12
      %p161 = scmp.lt.s32.totalorder %s12, 3
      %p162 = pnand %p160, %p161
      %p163 = pneg %p162
      // Predicated region
      $region29: #{tpu_custom_call.1} parent=5 // pred_check
        _
      $region30: #{tpu_custom_call.1} parent=5 // pred_check_branch
        %165 = sbr.rel (%p162) target = $region32
      $region31: #{tpu_custom_call.1} parent=5 // pred_region
        %s166 = ssub.s32 %s12, 1
        %s167 = smul.u32 2, %s22
        %p168 = scmp.lt.s32.totalorder %s21, 1
        %s169 = scalar_select %p168, %s21, 1
        %p170 = scmp.lt.s32.totalorder %s167, 1
        %s171 = scalar_select %p170, %s167, 1
        %s172 = smul.addr %s169, 2
        %s173 = sadd.s32 %s171, %s172
        %s174 = smul.addr %s173, 8
        %s175 = scalar_lea.vmem %s0, %s174
        %p176 = pneg %p52
        %p177 = pneg %p49
        %p178 = pneg %p73
        %p179 = pneg %p70
        %p180 = pneg %p94
        %p181 = pneg %p91
        %p182 = pneg %p122
        %p183 = pneg %p119
        %s184 = sand.u32 %s109, 1
        %s185 = scalar_lea.sflag [#allocation3], %s184
        %s186 = sand.u32 %s109, 1
        %s187 = smul.addr %s186, 16
        %s188 = scalar_lea.vmem [#allocation2], %s187
        %s189 = smul.u32 2, %s22
        %p190 = scmp.lt.s32.totalorder %s21, 1
        %s191 = scalar_select %p190, %s21, 1
        %p192 = scmp.lt.s32.totalorder %s189, 1
        %s193 = scalar_select %p192, %s189, 1
        %s194 = smul.addr %s191, 2
        %s195 = sadd.s32 %s193, %s194
        %s196 = smul.addr %s195, 8
        %s197 = scalar_lea.vmem %s0, %s196
        %s198 = smul.u32 2, %s22
        %s199 = smul.u32 2, %s22
        %v200 = vld [vmem:[%s197] sm:$0xff]
        %v201 = vld [vmem:[%s197 + $0x8] sm:$0xff]
        %v202 = vld [vmem:[%s1] sm:$0x3f]
        %v203 = vld [vmem:[%s2] sm:$0x1]
        %v205 = vlaneseq
        %v206 = vshrl.u32 %v205, 7
        %v207 = vsub.s32 0, %v206
        %v208 = vrot.slane %v203, %v207
        %vm210 = vcmask 48128
        %v212 = vsel %vm210, %v200, 0
        %v215 = vsel %vm210, %v201, 0
        %vm217 = vcmask 1045504
        %v219 = vsel %vm217, %v202, 0
        %221 = vmatprep.subr.mxu0 0.0
        %222 = vmatpush1.msra.mxu0 %v219
        %223 = vmatprep.subr.mxu0 0.0
        %224 = vmatpush1.msra.mxu0 0.0
        %225 = vmatprep.subr.mxu0 0.0
        %226 = vmatpush1.msra.mxu0 0.0
        %227 = vmatprep.subr.mxu0 0.0
        %228 = vmatpush1.msra.mxu0 0.0
        %229 = vmatprep.subr.mxu0 0.0
        %230 = vmatpush1.msra.mxu0 0.0
        %231 = vmatprep.subr.mxu0 0.0
        %232 = vmatpush1.msra.mxu0 0.0
        %233 = vmatprep.subr.mxu0 0.0
        %234 = vmatpush1.msra.mxu0 0.0
        %235 = vmatprep.subr.mxu0 0.0
        %236 = vmatpush1.msra.mxu0 0.0
        %237 = vmatprep.subr.mxu0 0.0
        %238 = vmatpush1.msra.mxu0 0.0
        %239 = vmatprep.subr.mxu0 0.0
        %240 = vmatpush1.msra.mxu0 0.0
        %241 = vmatprep.subr.mxu0 0.0
        %242 = vmatpush1.msra.mxu0 0.0
        %243 = vmatprep.subr.mxu0 0.0
        %244 = vmatpush1.msra.mxu0 0.0
        %245 = vmatprep.subr.mxu0 0.0
        %246 = vmatpush1.msra.mxu0 0.0
        %247 = vmatprep.subr.mxu0 0.0
        %248 = vmatpush1.msra.mxu0 0.0
        %249 = vmatprep.subr.mxu0 0.0
        %250 = vmatpush1.msra.mxu0 0.0
        %251 = vmatprep.subr.mxu0 0.0
        %252 = vmatpush1.msra.mxu0 0.0
        %253 = vmatprep.subr.mxu0 0.0
        %254 = vmatpush1.msra.mxu0 0.0
        %255 = vmatprep.subr.mxu0 0.0
        %256 = vmatpush1.msra.mxu0 0.0
        %257 = vmatprep.subr.mxu0 0.0
        %258 = vmatpush1.msra.mxu0 0.0
        %259 = vmatprep.subr.mxu0 0.0
        %260 = vmatpush1.msra.mxu0 0.0
        %261 = vmatprep.subr.mxu0 0.0
        %262 = vmatpush1.msra.mxu0 0.0
        %263 = vmatprep.subr.mxu0 0.0
        %264 = vmatpush1.msra.mxu0 0.0
        %265 = vmatprep.subr.mxu0 0.0
        %266 = vmatpush1.msra.mxu0 0.0
        %267 = vmatprep.subr.mxu0 0.0
        %268 = vmatpush1.msra.mxu0 0.0
        %269 = vmatprep.subr.mxu0 0.0
        %270 = vmatpush1.msra.mxu0 0.0
        %271 = vmatprep.subr.mxu0 0.0
        %272 = vmatpush1.msra.mxu0 0.0
        %273 = vmatprep.subr.mxu0 0.0
        %274 = vmatpush1.msra.mxu0 0.0
        %275 = vmatprep.subr.mxu0 0.0
        %276 = vmatpush1.msra.mxu0 0.0
        %277 = vmatprep.subr.mxu0 0.0
        %278 = vmatpush1.msra.mxu0 0.0
        %279 = vmatprep.subr.mxu0 0.0
        %280 = vmatpush1.msra.mxu0 0.0
        %281 = vmatprep.subr.mxu0 0.0
        %282 = vmatpush1.msra.mxu0 0.0
        %283 = vmatprep.subr.mxu0 0.0
        %284 = vmatpush1.msra.mxu0 0.0
        %285 = vmatprep.mubr.f32.mxu0 0.0
        %286 = vmatmul.mubr.f32.gmra.mrb[0].mxu0 %v212
        %v287 = vpop.f32.mrb[0].mxu0
        %v288 = vadd.f32 %v208, %v287
        %v289 = vpop.f32.mrb[0].mxu0
        %290 = vmatprep.mubr.f32.mxu0 0.0
        %291 = vmatmul.mubr.f32.gmra.mrb[0].mxu0 %v215
        %v292 = vpop.f32.mrb[0].mxu0
        %v293 = vadd.f32 %v208, %v292
        %v294 = vpop.f32.mrb[0].mxu0
        %295 = vdwg.mxu0
        %v296 = vand.u32 2147483647, %v288
        %vm297 = vcmp.le.f32.partialorder %v296, 0.7853982
        %vm298 = vcmp.lt.s32.totalorder %v288, 0
        %v299 = vand.u32 %v288, 2139095040
        %v300 = vshrl.u32 %v299, 23
        %v301 = vsub.s32 %v300, 127
        %v302 = vand.u32 2147483647, %v288
        %v303 = vand.u32 %v302, 8388607
        %v304 = vor.u32 %v303, 8388608
        %v305 = vsub.s32 0, %v304
        %v306 = vadd.s32 %v301, 1
        %vm307 = vcmp.gt.s32.totalorder %v306, 0
        %v308 = vsel %vm307, %v306, 0
        %v309 = vshrl.u32 %v308, 5
        %v310 = vand.u32 %v308, 31
        %v311 = vsub.s32 32, %v310
        %v312 = vshrl.u32 683565275, %v311
        %v313 = vshll.u32 683565275, %v310
        %v314 = vshrl.u32 2475754826, %v311
        %v315 = vor.u32 %v313, %v314
        %v316 = vshll.u32 2475754826, %v310
        %v317 = vshrl.u32 2131351028, %v311
        %v318 = vor.u32 %v316, %v317
        %v319 = vshll.u32 2131351028, %v310
        %v320 = vshrl.u32 2102212464, %v311
        %v321 = vor.u32 %v319, %v320
        %v322 = vshll.u32 2102212464, %v310
        %v323 = vshrl.u32 920167782, %v311
        %v324 = vor.u32 %v322, %v323
        %v325 = vshll.u32 920167782, %v310
        %v326 = vshrl.u32 1326507024, %v311
        %v327 = vor.u32 %v325, %v326
        %vm328 = vcmp.lt.s32.totalorder %v309, 1
        %vm329 = vcmp.lt.s32.totalorder %v309, 2
        %vm330 = vcmp.lt.s32.totalorder %v309, 3
        %vm331 = vcmp.lt.s32.totalorder %v309, 4
        %v332 = vsel %vm328, %v312, %v315
        %v333 = vsel %vm331, %v321, 2102212464
        %v334 = vsel %vm330, %v318, %v333
        %v335 = vsel %vm329, %v332, %v334
        %v336 = vsel %vm328, %v315, %v318
        %v337 = vsel %vm331, %v324, 920167782
        %v338 = vsel %vm330, %v321, %v337
        %v339 = vsel %vm329, %v336, %v338
        %v340 = vsel %vm328, %v318, %v321
        %v341 = vsel %vm331, %v327, 1326507024
        %v342 = vsel %vm330, %v324, %v341
        %v343 = vsel %vm329, %v340, %v342
        %v344 = vshll.u32 %v304, 8
        %v345 = vmul.u32.u64.compose %v344, %v343
        %v346 = vextract.low.u32 %v345
        %v347 = vextract.high.u32 %v345
        %v348 = vmul.u32.u64.compose %v344, %v339
        %v349 = vextract.low.u32 %v348
        %v350 = vextract.high.u32 %v348
        %v351 = vmul.u32 %v344, %v335
        %v352 = vadd.s32 %v347, %v349
        %vm353 = vc.u32 %v347, %v349
        %v354 = vadd.s32 %v350, 1
        %v355 = vsel %vm353, %v354, %v350
        %v356 = vadd.s32 %v351, %v355
        %v357 = vadd.s32 %v356, 536870912
        %v358 = vshrl.u32 %v357, 30
        %v359 = vshll.u32 %v358, 30
        %v360 = vsub.s32 %v356, %v359
        %vm361 = vcmp.lt.s32.totalorder %v360, 0
        %v362 = vsub.s32 0, %v360
        %v363 = vsel %vm361, %v362, %v360
        %v364 = vclz %v363
        %v365 = vsub.s32 %v364, 2
        %vm366 = vcmp.gt.s32.totalorder 0, %v365
        %v367 = vsel %vm366, 0, %v365
        %v368 = vsub.s32 32, %v367
        %v369 = vshll.u32 %v360, %v367
        %v370 = vshrl.u32 %v352, %v368
        %v371 = vor.u32 %v369, %v370
        %v372 = vsub.s32 4294967266, %v367
        %v373 = vadd.s32 %v372, 127
        %v374 = vshll.u32 %v373, 23
        %v375 = vor.u32 4788187, %v374
        %v376 = vand.u32 2147483647, %v375
        %v378 = vcvt.s32.f32 %v371
        %v379 = vmul.f32 %v378, %v376
        %v380 = vxor.u32 %v379, 2147483648
        %v381 = vsel %vm298, %v380, %v379
        %v382 = vsub.s32 4, %v358
        %v383 = vsel %vm298, %v382, %v358
        %v384 = vsel %vm297, %v288, %v381
        %v385 = vsel %vm297, 0, %v383
        %v386 = vcosq.f32.pop %v384
        %v387 = vsinq.f32.pop %v384
        %vm388 = vweird.f32 %v288
        %v389 = vadd.s32 %v385, 3
        %v390 = vand.u32 %v389, 3
        %vm391 = vcmp.lt.s32.totalorder %v390, 2
        %vm392 = vcmp.eq.s32.totalorder %v390, 0
        %v393 = vxor.u32 %v387, 2147483648
        %v394 = vsel %vm392, %v386, %v393
        %vm395 = vcmp.eq.s32.totalorder %v390, 2
        %v396 = vxor.u32 %v386, 2147483648
        %v397 = vsel %vm395, %v396, %v387
        %v398 = vsel %vm391, %v394, %v397
        %v399 = vsel %vm388, nan, %v398
        %v400 = vand.u32 2147483647, %v293
        %vm401 = vcmp.le.f32.partialorder %v400, 0.7853982
        %vm402 = vcmp.lt.s32.totalorder %v293, 0
        %v403 = vand.u32 %v293, 2139095040
        %v404 = vshrl.u32 %v403, 23
        %v405 = vsub.s32 %v404, 127
        %v406 = vand.u32 2147483647, %v293
        %v407 = vand.u32 %v406, 8388607
        %v408 = vor.u32 %v407, 8388608
        %v409 = vsub.s32 0, %v408
        %v410 = vadd.s32 %v405, 1
        %vm411 = vcmp.gt.s32.totalorder %v410, 0
        %v412 = vsel %vm411, %v410, 0
        %v413 = vshrl.u32 %v412, 5
        %v414 = vand.u32 %v412, 31
        %v415 = vsub.s32 32, %v414
        %v416 = vshrl.u32 683565275, %v415
        %v417 = vshll.u32 683565275, %v414
        %v418 = vshrl.u32 2475754826, %v415
        %v419 = vor.u32 %v417, %v418
        %v420 = vshll.u32 2475754826, %v414
        %v421 = vshrl.u32 2131351028, %v415
        %v422 = vor.u32 %v420, %v421
        %v423 = vshll.u32 2131351028, %v414
        %v424 = vshrl.u32 2102212464, %v415
        %v425 = vor.u32 %v423, %v424
        %v426 = vshll.u32 2102212464, %v414
        %v427 = vshrl.u32 920167782, %v415
        %v428 = vor.u32 %v426, %v427
        %v429 = vshll.u32 920167782, %v414
        %v430 = vshrl.u32 1326507024, %v415
        %v431 = vor.u32 %v429, %v430
        %vm432 = vcmp.lt.s32.totalorder %v413, 1
        %vm433 = vcmp.lt.s32.totalorder %v413, 2
        %vm434 = vcmp.lt.s32.totalorder %v413, 3
        %vm435 = vcmp.lt.s32.totalorder %v413, 4
        %v436 = vsel %vm432, %v416, %v419
        %v437 = vsel %vm435, %v425, 2102212464
        %v438 = vsel %vm434, %v422, %v437
        %v439 = vsel %vm433, %v436, %v438
        %v440 = vsel %vm432, %v419, %v422
        %v441 = vsel %vm435, %v428, 920167782
        %v442 = vsel %vm434, %v425, %v441
        %v443 = vsel %vm433, %v440, %v442
        %v444 = vsel %vm432, %v422, %v425
        %v445 = vsel %vm435, %v431, 1326507024
        %v446 = vsel %vm434, %v428, %v445
        %v447 = vsel %vm433, %v444, %v446
        %v448 = vshll.u32 %v408, 8
        %v449 = vmul.u32.u64.compose %v448, %v447
        %v450 = vextract.low.u32 %v449
        %v451 = vextract.high.u32 %v449
        %v452 = vmul.u32.u64.compose %v448, %v443
        %v453 = vextract.low.u32 %v452
        %v454 = vextract.high.u32 %v452
        %v455 = vmul.u32 %v448, %v439
        %v456 = vadd.s32 %v451, %v453
        %vm457 = vc.u32 %v451, %v453
        %v458 = vadd.s32 %v454, 1
        %v459 = vsel %vm457, %v458, %v454
        %v460 = vadd.s32 %v455, %v459
        %v461 = vadd.s32 %v460, 536870912
        %v462 = vshrl.u32 %v461, 30
        %v463 = vshll.u32 %v462, 30
        %v464 = vsub.s32 %v460, %v463
        %vm465 = vcmp.lt.s32.totalorder %v464, 0
        %v466 = vsub.s32 0, %v464
        %v467 = vsel %vm465, %v466, %v464
        %v468 = vclz %v467
        %v469 = vsub.s32 %v468, 2
        %vm470 = vcmp.gt.s32.totalorder 0, %v469
        %v471 = vsel %vm470, 0, %v469
        %v472 = vsub.s32 32, %v471
        %v473 = vshll.u32 %v464, %v471
        %v474 = vshrl.u32 %v456, %v472
        %v475 = vor.u32 %v473, %v474
        %v476 = vsub.s32 4294967266, %v471
        %v477 = vadd.s32 %v476, 127
        %v478 = vshll.u32 %v477, 23
        %v479 = vor.u32 4788187, %v478
        %v480 = vand.u32 2147483647, %v479
        %v482 = vcvt.s32.f32 %v475
        %v483 = vmul.f32 %v482, %v480
        %v484 = vxor.u32 %v483, 2147483648
        %v485 = vsel %vm402, %v484, %v483
        %v486 = vsub.s32 4, %v462
        %v487 = vsel %vm402, %v486, %v462
        %v488 = vsel %vm401, %v293, %v485
        %v489 = vsel %vm401, 0, %v487
        %v490 = vcosq.f32.pop %v488
        %v491 = vsinq.f32.pop %v488
        %vm492 = vweird.f32 %v293
        %v493 = vadd.s32 %v489, 3
        %v494 = vand.u32 %v493, 3
        %vm495 = vcmp.lt.s32.totalorder %v494, 2
        %vm496 = vcmp.eq.s32.totalorder %v494, 0
        %v497 = vxor.u32 %v491, 2147483648
        %v498 = vsel %vm496, %v490, %v497
        %vm499 = vcmp.eq.s32.totalorder %v494, 2
        %v500 = vxor.u32 %v490, 2147483648
        %v501 = vsel %vm499, %v500, %v491
        %v502 = vsel %vm495, %v498, %v501
        %v503 = vsel %vm492, nan, %v502
        %504 = vst [vmem:[%s188] sm:$0xff] %v399
        %505 = vst [vmem:[%s188 + $0x8] sm:$0xff] %v503
        %s506 = sand.u32 %s109, 1
        %s507 = scalar_lea.sflag [#allocation3], %s506
        %s508 = sand.u32 %s109, 1
        %s509 = smul.addr %s508, 16
        %s510 = scalar_lea.vmem [#allocation2], %s509
        // Predicated region
        $region33: #{tpu_custom_call.1} parent=31 // pred_check
          %p511 = pneg %p119
        $region34: #{tpu_custom_call.1} parent=31 // pred_check_branch
          %513 = sbr.rel (%p511) target = $region36
        $region35: #{tpu_custom_call.1} parent=31 // pred_region
          %s514 = smul.u32 2, %s22
          %s516 = ssub.s32 256, 256
          %517 = vsyncadd %s507, %s516
          %s518 = smul.addr %s21, 2
          %s519 = sadd.s32 %s514, %s518
          %s520 = smul.addr %s519, 128
          %s521 = scalar_lea.hbm %s3, %s520
          %s522 = sshll.u32 %s510, 4
          %s523 = int_to_ptr.vmem [resolvable:$true] %s522
          %528 = dma.vmem_to_hbm [thread:$0]  %s523, 256, %s521, %s507, 128, 128, 8
        $region36: #{tpu_custom_call.1} parent=31 // pred_fallthru
          _
      $region32: #{tpu_custom_call.1} parent=5 // pred_fallthru
        _
      %p529 = scmp.le.s32.totalorder 2, %s12
      // Predicated region
      $region37: #{tpu_custom_call.1} parent=5 // pred_check
        %p530 = pneg %p529
      $region38: #{tpu_custom_call.1} parent=5 // pred_check_branch
        %532 = sbr.rel (%p530) target = $region40
      $region39: #{tpu_custom_call.1} parent=5 // pred_region
        %s533 = ssub.s32 %s12, 2
        // Predicated region
        $region41: #{tpu_custom_call.1} parent=39 // pred_check
          %p534 = pneg %p125
        $region42: #{tpu_custom_call.1} parent=39 // pred_check_branch
          %536 = sbr.rel (%p534) target = $region44
        $region43: #{tpu_custom_call.1} parent=39 // pred_region
          %s537 = sand.u32 %s110, 1
          %s538 = scalar_lea.sflag [#allocation3], %s537
          %s539 = sand.u32 %s110, 1
          %s540 = smul.addr %s539, 16
          %s541 = scalar_lea.vmem [#allocation2], %s540
          %542 = dma.done %s538, 256
        $region44: #{tpu_custom_call.1} parent=39 // pred_fallthru
          _
      $region40: #{tpu_custom_call.1} parent=5 // pred_fallthru
        _
    $region6: #{tpu_custom_call.1} parent=1 // loop_footer
      %s16 = sadd.s32 1, %s12
    $region7: #{tpu_custom_call.1} parent=1 // loop_footer_branch
      %11 = sbr.rel target = $region3
    $region8: #{tpu_custom_call.1} parent=1 // loop_exit
      _
    %543 = vsyncpa [#allocation3], 1
    %s544 = scalar_lea.sflag [#allocation3], 1
    %545 = vsyncpa %s544, 1

</llo_original>
